<compile_context>
chip_gen: v7x
topology: tpu7x:2x2x1
jax: 0.10.0
libtpu: 0.0.40
codegen_flags: <defaults>
</compile_context>

<pallas_src>
import jax
import jax.numpy as jnp
from jax.experimental import pallas as pl
from jax.experimental.pallas import tpu as pltpu


_LANE_WIDTH = 1024   # lane-dense last dim (multiple of 128)
_TILE_ROWS = 512     # rows per grid step for large inputs (multiple of 8)


def _linear_kernel(w_ref, b_ref, x_ref, o_ref):
    # w_ref, b_ref: (1,) scalars in SMEM; x_ref / o_ref: (tile_rows, lane) VMEM tiles.
    # Fused multiply-add on the VPU; intentionally no jnp.dot / MXU.
    o_ref[...] = x_ref[...] * w_ref[0] + b_ref[0]


def linear_forward(x, weight, bias):
    """x: (N, 1), weight: (1, 1), bias: (1,)  ->  (N, 1) = x @ W^T + b."""
    n, f = x.shape
    assert f == 1, "LinearRegression expects in_features == 1"
    dtype = x.dtype
    w = jnp.reshape(weight, (1,)).astype(dtype)
    b = jnp.reshape(bias, (1,)).astype(dtype)

    # ---- lane-dense repack: (N, 1) -> (rows, _LANE_WIDTH) slab ----
    lane = _LANE_WIDTH
    rows = -(-n // lane)                              # ceil(N / lane)
    if rows >= _TILE_ROWS:
        tile_rows = _TILE_ROWS
        rows = -(-rows // tile_rows) * tile_rows      # pad rows to a tile multiple
    else:
        tile_rows = max(rows, 1)                      # single block == full row extent
        rows = tile_rows
    padded = rows * lane

    flat = jnp.reshape(x, (n,))
    flat = jnp.pad(flat, (0, padded - n))             # zero pad; sliced off afterwards
    slab = jnp.reshape(flat, (rows, lane))

    grid = (rows // tile_rows,)
    itemsize = jnp.dtype(dtype).itemsize

    out_slab = pl.pallas_call(
        _linear_kernel,
        out_shape=jax.ShapeDtypeStruct((rows, lane), dtype),
        grid=grid,
        in_specs=[
            pl.BlockSpec(memory_space=pltpu.SMEM),            # weight scalar
            pl.BlockSpec(memory_space=pltpu.SMEM),            # bias scalar
            pl.BlockSpec((tile_rows, lane), lambda i: (i, 0)),  # x slab tile
        ],
        out_specs=pl.BlockSpec((tile_rows, lane), lambda i: (i, 0)),
        compiler_params=pltpu.CompilerParams(
            dimension_semantics=("parallel",),     # megacore sharding on v7x; neutral elsewhere
            vmem_limit_bytes=32 * 1024 * 1024,     # headroom; tiles need ~8 MiB double-buffered
        ),
        cost_estimate=pl.CostEstimate(
            flops=2 * padded,
            transcendentals=0,
            bytes_accessed=2 * padded * itemsize,  # read slab + write slab
        ),
    )(w, b, slab)

    return jnp.reshape(out_slab, (padded,))[:n].reshape(n, 1)


if __name__ == "__main__":
    key = jax.random.PRNGKey(0)
    kx, kw, kb = jax.random.split(key, 3)

    # Deterministic synthetic parameters for nn.Linear(1, 1): W (1, 1), b (1,)
    weight = jax.random.normal(kw, (1, 1), dtype=jnp.float32)
    bias = jax.random.normal(kb, (1,), dtype=jnp.float32)

    # Small batch of scalar inputs, shape (N, 1)
    x = jax.random.normal(kx, (8, 1), dtype=jnp.float32)
    out = jax.block_until_ready(linear_forward(x, weight, bias))
    ref = x @ weight.T + bias
    assert out.shape == (8, 1)
    assert jnp.allclose(out, ref, atol=1e-6), "mismatch vs reference (N=8)"

    # Extra check: batch size that is not a multiple of the lane width, to
    # exercise the pad / lane-dense repack / unpad path.
    x2 = jax.random.normal(kx, (3000, 1), dtype=jnp.float32)
    out2 = jax.block_until_ready(linear_forward(x2, weight, bias))
    ref2 = x2 @ weight.T + bias
    assert out2.shape == (3000, 1)
    assert jnp.allclose(out2, ref2, atol=1e-6), "mismatch vs reference (N=3000)"

    # TODO(synk): train() (SGD / MSELoss / torch.save) is not part of forward and is not implemented.
    print("KERNEL_OK")
</pallas_src>

<mosaic_0001>
module attributes {stable_mosaic.version = 11 : i64} {
  func.func @_linear_kernel(%arg0: i32, %arg1: memref<1xf32, #tpu.memory_space<smem>>, %arg2: memref<1xf32, #tpu.memory_space<smem>>, %arg3: memref<1x1024xf32, #tpu.memory_space<vmem>>, %arg4: memref<1x1024xf32, #tpu.memory_space<vmem>>) attributes {dimension_semantics = [#tpu.dimension_semantics<parallel>], iteration_bounds = array<i64: 1>, scalar_prefetch = 0 : i64, scratch_operands = 0 : i64, tpu.core_type = #tpu.core_type<tc>, window_params = [{transform_indices = @transform_0, window_bounds = array<i64: 1>}, {transform_indices = @transform_1, window_bounds = array<i64: 1>}, {transform_indices = @transform_2, window_bounds = array<i64: 1, 1024>}, {transform_indices = @transform_3, window_bounds = array<i64: 1, 1024>}]} {
    %c0 = arith.constant 0 : index
    %c0_0 = arith.constant 0 : index
    %0 = vector.load %arg3[%c0, %c0_0] : memref<1x1024xf32, #tpu.memory_space<vmem>>, vector<1x1024xf32>
    %c0_1 = arith.constant 0 : index
    %1 = memref.load %arg1[%c0_1] : memref<1xf32, #tpu.memory_space<smem>>
    %2 = vector.broadcast %1 : f32 to vector<1x1024xf32>
    %3 = arith.mulf %0, %2 : vector<1x1024xf32>
    %c0_2 = arith.constant 0 : index
    %4 = memref.load %arg2[%c0_2] : memref<1xf32, #tpu.memory_space<smem>>
    %5 = vector.broadcast %4 : f32 to vector<1x1024xf32>
    %6 = arith.addf %3, %5 : vector<1x1024xf32>
    %c0_3 = arith.constant 0 : index
    %c0_4 = arith.constant 0 : index
    %7 = vector.load %arg4[%c0_3, %c0_4] : memref<1x1024xf32, #tpu.memory_space<vmem>>, vector<1x1024xf32>
    tpu.vector_store %arg4[%c0_3, %c0_4], %6 {strides = array<i32>} : memref<1x1024xf32, #tpu.memory_space<vmem>>, vector<1x1024xf32>,
    return
  }
  func.func @transform_0(%arg0: i32) -> i32 {
    %c0_i32 = arith.constant 0 : i32
    %c0_i32_0 = arith.constant 0 : i32
    return %c0_i32 : i32
  }
  func.func @transform_1(%arg0: i32) -> i32 {
    %c0_i32 = arith.constant 0 : i32
    %c0_i32_0 = arith.constant 0 : i32
    return %c0_i32 : i32
  }
  func.func @transform_2(%arg0: i32) -> (i32, i32) {
    %c0_i32 = arith.constant 0 : i32
    %c0_i32_0 = arith.constant 0 : i32
    return %arg0, %c0_i32 : i32, i32
  }
  func.func @transform_3(%arg0: i32) -> (i32, i32) {
    %c0_i32 = arith.constant 0 : i32
    %c0_i32_0 = arith.constant 0 : i32
    return %arg0, %c0_i32 : i32, i32
  }
}

</mosaic_0001>

<llo_original>
// kernel: tpu_custom_call.1
$region0: #{tpu_custom_call.1}
  #allocation0 [shape = 'u32[]', space=smem, size = 0x4, offset = 0x4, fixed_abs, tag = 'smem constant byte address 0x4 - core index']
  #allocation1 [shape = 'u32[144,128]{1,0:T(1,128)}', space=vmem, size = 0x12000, scoped, tag = 'internal scratch']
  #allocation2 [shape = 'f32[1]{0:T(128)S(6)}', space=smem, size = 0x200, scoped, tag = 'scoped memory for tpu_custom_call.1']
  #allocation3 [shape = 'f32[1]{0:T(128)S(6)}', space=smem, size = 0x200, scoped, tag = 'scoped memory for tpu_custom_call.1']
  %s0 = inlined_call_operand.<no memory space> [shape: f32[1], index: 0, kind: input, shape index: {}]
  %s1 = inlined_call_operand.<no memory space> [shape: f32[1], index: 1, kind: input, shape index: {}]
  %s2 = inlined_call_operand.hbm [shape: f32[1,1024], index: 2, kind: input, shape index: {}]
  %s3 = inlined_call_operand.hbm [shape: f32[1,1024], index: 3, kind: output, shape index: {}]
  %s4 = sld [smem:[#allocation0]]
  $region26: #{tpu_custom_call.1} parent=0
    _
  %s6 = ssub.s32 1, %s4
  %s7 = scalar_select 0, %s6, %s4
  %8 = sst [smem:[#allocation2]] %s0
  %9 = sst [smem:[#allocation3]] %s1
  $region1: #{tpu_custom_call.1} parent=0
    #allocation4 [shape = 'u8[4096]{0}', space=vmem, size = 0x1000, scoped, tag = 'input window, operand 2, single buffered']
    #allocation5 [shape = 's32[1]{0}', space=sflag, size = 0x4, scoped, tag = 'scoped memory for tpu_custom_call.1']
    #allocation6 [shape = 's32[1]{0}', space=sflag, size = 0x4, scoped, tag = 'scoped memory for tpu_custom_call.1']
    #allocation7 [shape = 'u8[4096]{0}', space=vmem, size = 0x1000, scoped, tag = 'output window, operand 0, single buffered']
    %10 = vsyncpa [#allocation5], 0
    %11 = vsyncpa [#allocation6], 0
    // Predicated region
    $region2: #{tpu_custom_call.1} parent=1 // pred_check
      _
    $region3: #{tpu_custom_call.1} parent=1 // pred_check_branch
      %13 = sbr.rel (0) target = $region5
    $region4: #{tpu_custom_call.1} parent=1 // pred_region
      _
    $region5: #{tpu_custom_call.1} parent=1 // pred_fallthru
      _
    // Predicated region
    $region6: #{tpu_custom_call.1} parent=1 // pred_check
      _
    $region7: #{tpu_custom_call.1} parent=1 // pred_check_branch
      %15 = sbr.rel (0) target = $region9
    $region8: #{tpu_custom_call.1} parent=1 // pred_region
      _
    $region9: #{tpu_custom_call.1} parent=1 // pred_fallthru
      _
    // Predicated region
    $region10: #{tpu_custom_call.1} parent=1 // pred_check
      _
    $region11: #{tpu_custom_call.1} parent=1 // pred_check_branch
      %17 = sbr.rel (0) target = $region13
    $region12: #{tpu_custom_call.1} parent=1 // pred_region
      %s19 = ssub.s32 128, 128
      %20 = vsyncadd [#allocation5], %s19
      %s22 = sshll.u32 [#allocation4], 4
      %s23 = int_to_ptr.vmem [resolvable:$true] %s22
      %25 = dma.hbm_to_vmem [thread:$0]  %s2, 128, %s23, [#allocation5]
    $region13: #{tpu_custom_call.1} parent=1 // pred_fallthru
      _
    // Predicated region
    $region14: #{tpu_custom_call.1} parent=1 // pred_check
      _
    $region15: #{tpu_custom_call.1} parent=1 // pred_check_branch
      %27 = sbr.rel (0) target = $region17
    $region16: #{tpu_custom_call.1} parent=1 // pred_region
      %28 = dma.done [#allocation5], 128
    $region17: #{tpu_custom_call.1} parent=1 // pred_fallthru
      _
    %v29 = vld [vmem:[#allocation4] sm:$0xff]
    %s30 = sld [smem:[#allocation2]]
    %v31 = vstv %s30
    %v32 = vmul.f32 %v29, %v31
    %s33 = sld [smem:[#allocation3]]
    %v34 = vstv %s33
    %v35 = vadd.f32 %v32, %v34
    %36 = vst [vmem:[#allocation7] sm:$0xff] %v35
    // Predicated region
    $region18: #{tpu_custom_call.1} parent=1 // pred_check
      _
    $region19: #{tpu_custom_call.1} parent=1 // pred_check_branch
      %38 = sbr.rel (0) target = $region21
    $region20: #{tpu_custom_call.1} parent=1 // pred_region
      %s40 = ssub.s32 128, 128
      %41 = vsyncadd [#allocation6], %s40
      %s43 = sshll.u32 [#allocation7], 4
      %s44 = int_to_ptr.vmem [resolvable:$true] %s43
      %46 = dma.vmem_to_hbm [thread:$0]  %s44, 128, %s3, [#allocation6]
    $region21: #{tpu_custom_call.1} parent=1 // pred_fallthru
      _
    // Predicated region
    $region22: #{tpu_custom_call.1} parent=1 // pred_check
      _
    $region23: #{tpu_custom_call.1} parent=1 // pred_check_branch
      %48 = sbr.rel (0) target = $region25
    $region24: #{tpu_custom_call.1} parent=1 // pred_region
      %49 = dma.done [#allocation6], 128
    $region25: #{tpu_custom_call.1} parent=1 // pred_fallthru
      _
    %50 = vsyncpa [#allocation5], 1
    %51 = vsyncpa [#allocation6], 1

</llo_original>
